<compile_context>
chip_gen: v6e
topology: v6e:2x2x1
jax: 0.10.0
libtpu: 0.0.40
codegen_flags: <defaults>
</compile_context>

<pallas_src>
import jax
import jax.numpy as jnp
from jax.experimental import pallas as pl
from jax.experimental.pallas import tpu as pltpu


def _round_up(x, m):
    return (x + m - 1) // m * m


def towerq_rnn_kernel(p_ref, whh_ref, out_ref):
    """Tanh RNN recurrence over one batch tile.

    p_ref:   (T, TB, Hp)  pre-projected inputs (x @ W_ih^T + b_ih + b_hh),
                          time-major so each step reads a dense (TB, Hp) slab
    whh_ref: (Hp, Hp)     W_hh^T, zero-padded rows/cols to lane-dense Hp
    out_ref: (TB, Hp)     final hidden state h_T for this batch tile
    """
    T, TB, Hp = p_ref.shape

    # TODO(synk): verify in the bundle dump that Mosaic keeps W_hh stationary on
    # the MXU across steps; if not, drive pltpu.matmul_push_rhs explicitly.
    whh = whh_ref[...]

    def step(t, h):
        # p_ref[t] is a contiguous (TB, Hp) VMEM load; MXU matmul + EUP tanh.
        return jnp.tanh(
            p_ref[t] + jnp.dot(h, whh, preferred_element_type=jnp.float32)
        )

    h0 = jnp.zeros((TB, Hp), jnp.float32)
    if T <= 16:
        # Short sequences: full unroll, h stays in vregs, LLO can overlap the
        # EUP tanh of step t with the MXU push of step t+1.
        h = h0
        for t in range(T):
            h = step(t, h)
    else:
        # Long sequences: bounded unroll keeps vreg pressure / imem in check.
        h = jax.lax.fori_loop(0, T, step, h0, unroll=8)

    out_ref[...] = h.astype(out_ref.dtype)


def tower_q_forward(tokens, embedding_table, w_ih, w_hh, b_ih, b_hh,
                    *, batch_tile=None):
    """tokens: (B, T) int32.  Returns (B, H) float32 (== PyTorch x.squeeze(0))."""
    B, T = tokens.shape
    V, E = embedding_table.shape
    H = w_ih.shape[0]

    # Lane-dense / sublane-aligned padded sizes (f32): H -> multiple of 128.
    Hp = _round_up(H, 128)

    # Batch tile: multiple of 8 sublanes, capped at 256 (fills MXU rows on
    # v6e/v7x per recurrent step while bounding per-step VMEM residency).
    if batch_tile is None:
        batch_tile = min(_round_up(B, 8), 256)
    TB = _round_up(min(batch_tile, 256), 8)
    Bp = _round_up(B, TB)
    grid_b = Bp // TB

    bias = (b_ih + b_hh).astype(jnp.float32)

    if H <= E:
        # Algorithmic shortcut: fold the input projection into the embedding
        # table once (vocab x H), then gather pre-projected rows directly.
        # Gathering with tokens.T yields a time-major (T, B, H) slab for free.
        p_table = (embedding_table.astype(jnp.float32)
                   @ w_ih.T.astype(jnp.float32) + bias)            # (V, H)
        p = jnp.take(p_table, tokens.T, axis=0)                    # (T, B, H)
    else:
        # TODO(synk): for H > E, fuse the gather + (B*T,E)x(E,H) projection into
        # the kernel (PrefetchScalarGridSpec scalar-prefetched tokens) to avoid
        # streaming the wider H-sized activations through HBM.
        x_emb = jnp.take(embedding_table, tokens.T, axis=0).astype(jnp.float32)
        p = jnp.einsum('tbe,eh->tbh', x_emb, w_ih.T.astype(jnp.float32)) + bias

    # Zero padding is inert: padded hidden columns and padded batch rows stay
    # exactly 0 through tanh, so slicing at the end is exact.
    p = jnp.pad(p, ((0, 0), (0, Bp - B), (0, Hp - H)))             # (T, Bp, Hp)
    whh_t = jnp.pad(w_hh.T.astype(jnp.float32),
                    ((0, Hp - H), (0, Hp - H)))                    # (Hp, Hp)

    # VMEM budget derived from actual tile bytes (double-buffered p tile +
    # weights + output), clamped under v7x's 64 MiB physical VMEM.
    p_tile_bytes = T * TB * Hp * 4
    whh_bytes = Hp * Hp * 4
    out_tile_bytes = TB * Hp * 4
    vmem_bytes = 2 * p_tile_bytes + 2 * whh_bytes + 2 * out_tile_bytes + (1 << 20)
    vmem_bytes = int(min(max(vmem_bytes, 4 << 20), 60 << 20))

    out_padded = pl.pallas_call(
        towerq_rnn_kernel,
        out_shape=jax.ShapeDtypeStruct((Bp, Hp), jnp.float32),
        grid_spec=pltpu.PrefetchScalarGridSpec(
            num_scalar_prefetch=0,
            grid=(grid_b,),
            in_specs=[
                pl.BlockSpec((T, TB, Hp), lambda i: (0, i, 0)),
                pl.BlockSpec((Hp, Hp), lambda i: (0, 0)),
            ],
            out_specs=pl.BlockSpec((TB, Hp), lambda i: (i, 0)),
        ),
        compiler_params=pltpu.CompilerParams(
            dimension_semantics=("parallel",),
            vmem_limit_bytes=vmem_bytes,
        ),
    )(p, whh_t)

    return out_padded[:B, :H]


def tower_q_reference(tokens, embedding_table, w_ih, w_hh, b_ih, b_hh):
    """Pure-JAX reference matching torch.nn.RNN(batch_first=True) final state."""
    x_emb = jnp.take(embedding_table, tokens, axis=0)  # (B, T, E)
    B, T, _ = x_emb.shape
    H = w_ih.shape[0]
    bias = b_ih + b_hh
    h = jnp.zeros((B, H), jnp.float32)
    for t in range(T):
        h = jnp.tanh(x_emb[:, t, :] @ w_ih.T + bias + h @ w_hh.T)
    return h


if __name__ == "__main__":
    key = jax.random.PRNGKey(0)
    k_emb, k_wih, k_whh, k_bih, k_bhh, k_tok = jax.random.split(key, 6)

    # Small shapes consistent with the module.
    vocab_size = 64
    embedding_dim = 32
    hidden_dim = 32
    batch = 2
    seq = 8

    embedding_table = jax.random.normal(
        k_emb, (vocab_size, embedding_dim), jnp.float32) * 0.1
    w_ih = jax.random.normal(k_wih, (hidden_dim, embedding_dim), jnp.float32) * 0.1
    w_hh = jax.random.normal(k_whh, (hidden_dim, hidden_dim), jnp.float32) * 0.1
    b_ih = jax.random.normal(k_bih, (hidden_dim,), jnp.float32) * 0.1
    b_hh = jax.random.normal(k_bhh, (hidden_dim,), jnp.float32) * 0.1

    tokens = jax.random.randint(k_tok, (batch, seq), 0, vocab_size, jnp.int32)

    out = tower_q_forward(tokens, embedding_table, w_ih, w_hh, b_ih, b_hh)
    out = jax.block_until_ready(out)

    ref = tower_q_reference(tokens, embedding_table, w_ih, w_hh, b_ih, b_hh)
    assert out.shape == (batch, hidden_dim)
    assert jnp.allclose(out, ref, atol=1e-5, rtol=1e-5)

    print("KERNEL_OK")
</pallas_src>

<mosaic_0001>
module attributes {stable_mosaic.version = 11 : i64} {
  func.func @towerq_rnn_kernel(%arg0: i32, %arg1: memref<8x8x128xf32, #tpu.memory_space<vmem>>, %arg2: memref<128x128xf32, #tpu.memory_space<vmem>>, %arg3: memref<8x128xf32, #tpu.memory_space<vmem>>) attributes {dimension_semantics = [#tpu.dimension_semantics<parallel>], iteration_bounds = array<i64: 1>, scalar_prefetch = 0 : i64, scratch_operands = 0 : i64, tpu.core_type = #tpu.core_type<tc>, window_params = [{transform_indices = @transform_0, window_bounds = array<i64: 8, 8, 128>}, {pipeline_mode = #tpu.pipeline_mode<synchronous>, transform_indices = @transform_1, window_bounds = array<i64: 128, 128>}, {transform_indices = @transform_2, window_bounds = array<i64: 8, 128>}]} {
    %c0 = arith.constant 0 : index
    %c0_0 = arith.constant 0 : index
    %0 = vector.load %arg2[%c0, %c0_0] : memref<128x128xf32, #tpu.memory_space<vmem>>, vector<128x128xf32>
    %cst = arith.constant 0.000000e+00 : f32
    %1 = vector.broadcast %cst : f32 to vector<8x128xf32>
    %c0_1 = arith.constant 0 : index
    %c0_2 = arith.constant 0 : index
    %c0_3 = arith.constant 0 : index
    %2 = vector.load %arg1[%c0_1, %c0_2, %c0_3] : memref<8x8x128xf32, #tpu.memory_space<vmem>>, vector<1x8x128xf32>
    %3 = vector.shape_cast %2 : vector<1x8x128xf32> to vector<8x128xf32>
    %cst_4 = arith.constant dense<0.000000e+00> : vector<8x128xf32>
    %4 = tpu.matmul %1, %0, %cst_4 {dimension_numbers = #tpu.dot_dimension_numbers<[1], [0], [0], [1], [0, 0, 1, 1], [], []>} : vector<8x128xf32>, vector<128x128xf32>, vector<8x128xf32> -> vector<8x128xf32>
    %5 = arith.addf %3, %4 : vector<8x128xf32>
    %6 = math.tanh %5 : vector<8x128xf32>
    %c1 = arith.constant 1 : index
    %c0_5 = arith.constant 0 : index
    %c0_6 = arith.constant 0 : index
    %7 = vector.load %arg1[%c1, %c0_5, %c0_6] : memref<8x8x128xf32, #tpu.memory_space<vmem>>, vector<1x8x128xf32>
    %8 = vector.shape_cast %7 : vector<1x8x128xf32> to vector<8x128xf32>
    %cst_7 = arith.constant dense<0.000000e+00> : vector<8x128xf32>
    %9 = tpu.matmul %6, %0, %cst_7 {dimension_numbers = #tpu.dot_dimension_numbers<[1], [0], [0], [1], [0, 0, 1, 1], [], []>} : vector<8x128xf32>, vector<128x128xf32>, vector<8x128xf32> -> vector<8x128xf32>
    %10 = arith.addf %8, %9 : vector<8x128xf32>
    %11 = math.tanh %10 : vector<8x128xf32>
    %c2 = arith.constant 2 : index
    %c0_8 = arith.constant 0 : index
    %c0_9 = arith.constant 0 : index
    %12 = vector.load %arg1[%c2, %c0_8, %c0_9] : memref<8x8x128xf32, #tpu.memory_space<vmem>>, vector<1x8x128xf32>
    %13 = vector.shape_cast %12 : vector<1x8x128xf32> to vector<8x128xf32>
    %cst_10 = arith.constant dense<0.000000e+00> : vector<8x128xf32>
    %14 = tpu.matmul %11, %0, %cst_10 {dimension_numbers = #tpu.dot_dimension_numbers<[1], [0], [0], [1], [0, 0, 1, 1], [], []>} : vector<8x128xf32>, vector<128x128xf32>, vector<8x128xf32> -> vector<8x128xf32>
    %15 = arith.addf %13, %14 : vector<8x128xf32>
    %16 = math.tanh %15 : vector<8x128xf32>
    %c3 = arith.constant 3 : index
    %c0_11 = arith.constant 0 : index
    %c0_12 = arith.constant 0 : index
    %17 = vector.load %arg1[%c3, %c0_11, %c0_12] : memref<8x8x128xf32, #tpu.memory_space<vmem>>, vector<1x8x128xf32>
    %18 = vector.shape_cast %17 : vector<1x8x128xf32> to vector<8x128xf32>
    %cst_13 = arith.constant dense<0.000000e+00> : vector<8x128xf32>
    %19 = tpu.matmul %16, %0, %cst_13 {dimension_numbers = #tpu.dot_dimension_numbers<[1], [0], [0], [1], [0, 0, 1, 1], [], []>} : vector<8x128xf32>, vector<128x128xf32>, vector<8x128xf32> -> vector<8x128xf32>
    %20 = arith.addf %18, %19 : vector<8x128xf32>
    %21 = math.tanh %20 : vector<8x128xf32>
    %c4 = arith.constant 4 : index
    %c0_14 = arith.constant 0 : index
    %c0_15 = arith.constant 0 : index
    %22 = vector.load %arg1[%c4, %c0_14, %c0_15] : memref<8x8x128xf32, #tpu.memory_space<vmem>>, vector<1x8x128xf32>
    %23 = vector.shape_cast %22 : vector<1x8x128xf32> to vector<8x128xf32>
    %cst_16 = arith.constant dense<0.000000e+00> : vector<8x128xf32>
    %24 = tpu.matmul %21, %0, %cst_16 {dimension_numbers = #tpu.dot_dimension_numbers<[1], [0], [0], [1], [0, 0, 1, 1], [], []>} : vector<8x128xf32>, vector<128x128xf32>, vector<8x128xf32> -> vector<8x128xf32>
    %25 = arith.addf %23, %24 : vector<8x128xf32>
    %26 = math.tanh %25 : vector<8x128xf32>
    %c5 = arith.constant 5 : index
    %c0_17 = arith.constant 0 : index
    %c0_18 = arith.constant 0 : index
    %27 = vector.load %arg1[%c5, %c0_17, %c0_18] : memref<8x8x128xf32, #tpu.memory_space<vmem>>, vector<1x8x128xf32>
    %28 = vector.shape_cast %27 : vector<1x8x128xf32> to vector<8x128xf32>
    %cst_19 = arith.constant dense<0.000000e+00> : vector<8x128xf32>
    %29 = tpu.matmul %26, %0, %cst_19 {dimension_numbers = #tpu.dot_dimension_numbers<[1], [0], [0], [1], [0, 0, 1, 1], [], []>} : vector<8x128xf32>, vector<128x128xf32>, vector<8x128xf32> -> vector<8x128xf32>
    %30 = arith.addf %28, %29 : vector<8x128xf32>
    %31 = math.tanh %30 : vector<8x128xf32>
    %c6 = arith.constant 6 : index
    %c0_20 = arith.constant 0 : index
    %c0_21 = arith.constant 0 : index
    %32 = vector.load %arg1[%c6, %c0_20, %c0_21] : memref<8x8x128xf32, #tpu.memory_space<vmem>>, vector<1x8x128xf32>
    %33 = vector.shape_cast %32 : vector<1x8x128xf32> to vector<8x128xf32>
    %cst_22 = arith.constant dense<0.000000e+00> : vector<8x128xf32>
    %34 = tpu.matmul %31, %0, %cst_22 {dimension_numbers = #tpu.dot_dimension_numbers<[1], [0], [0], [1], [0, 0, 1, 1], [], []>} : vector<8x128xf32>, vector<128x128xf32>, vector<8x128xf32> -> vector<8x128xf32>
    %35 = arith.addf %33, %34 : vector<8x128xf32>
    %36 = math.tanh %35 : vector<8x128xf32>
    %c7 = arith.constant 7 : index
    %c0_23 = arith.constant 0 : index
    %c0_24 = arith.constant 0 : index
    %37 = vector.load %arg1[%c7, %c0_23, %c0_24] : memref<8x8x128xf32, #tpu.memory_space<vmem>>, vector<1x8x128xf32>
    %38 = vector.shape_cast %37 : vector<1x8x128xf32> to vector<8x128xf32>
    %cst_25 = arith.constant dense<0.000000e+00> : vector<8x128xf32>
    %39 = tpu.matmul %36, %0, %cst_25 {dimension_numbers = #tpu.dot_dimension_numbers<[1], [0], [0], [1], [0, 0, 1, 1], [], []>} : vector<8x128xf32>, vector<128x128xf32>, vector<8x128xf32> -> vector<8x128xf32>
    %40 = arith.addf %38, %39 : vector<8x128xf32>
    %41 = math.tanh %40 : vector<8x128xf32>
    %c0_26 = arith.constant 0 : index
    %c0_27 = arith.constant 0 : index
    %42 = vector.load %arg3[%c0_26, %c0_27] : memref<8x128xf32, #tpu.memory_space<vmem>>, vector<8x128xf32>
    tpu.vector_store %arg3[%c0_26, %c0_27], %41 {strides = array<i32>} : memref<8x128xf32, #tpu.memory_space<vmem>>, vector<8x128xf32>,
    return
  }
  func.func @transform_0(%arg0: i32) -> (i32, i32, i32) {
    %c0_i32 = arith.constant 0 : i32
    %c0_i32_0 = arith.constant 0 : i32
    %c0_i32_1 = arith.constant 0 : i32
    return %c0_i32, %arg0, %c0_i32_0 : i32, i32, i32
  }
  func.func @transform_1(%arg0: i32) -> (i32, i32) {
    %c0_i32 = arith.constant 0 : i32
    %c0_i32_0 = arith.constant 0 : i32
    %c0_i32_1 = arith.constant 0 : i32
    return %c0_i32, %c0_i32_0 : i32, i32
  }
  func.func @transform_2(%arg0: i32) -> (i32, i32) {
    %c0_i32 = arith.constant 0 : i32
    %c0_i32_0 = arith.constant 0 : i32
    return %arg0, %c0_i32 : i32, i32
  }
}

</mosaic_0001>

<llo_original>
// kernel: tpu_custom_call.1
$region0: #{tpu_custom_call.1}
  #allocation0 [shape = 'u32[]', space=smem, size = 0x4, offset = 0x4, fixed_abs, tag = 'smem constant byte address 0x4 - core index']
  #allocation1 [shape = 'u32[144,128]{1,0:T(1,128)}', space=vmem, size = 0x12000, scoped, tag = 'internal scratch']
  %s0 = inlined_call_operand.hbm [shape: f32[8,8,128], index: 0, kind: input, shape index: {}]
  %s1 = inlined_call_operand.hbm [shape: f32[128,128], index: 1, kind: input, shape index: {}]
  %s2 = inlined_call_operand.hbm [shape: f32[8,128], index: 2, kind: output, shape index: {}]
  %s3 = sld [smem:[#allocation0]]
  $region26: #{tpu_custom_call.1} parent=0
    _
  %s5 = ssub.s32 1, %s3
  %s6 = scalar_select 0, %s5, %s3
  $region1: #{tpu_custom_call.1} parent=0
    #allocation2 [shape = 'u8[32768]{0}', space=vmem, size = 0x8000, scoped, tag = 'input window, operand 0, single buffered']
    #allocation3 [shape = 's32[1]{0}', space=sflag, size = 0x4, scoped, tag = 'scoped memory for tpu_custom_call.1']
    #allocation4 [shape = 's32[1]{0}', space=sflag, size = 0x4, scoped, tag = 'scoped memory for tpu_custom_call.1']
    #allocation5 [shape = 'u8[65536]{0}', space=vmem, size = 0x10000, scoped, tag = 'input window, operand 1, single buffered']
    #allocation6 [shape = 's32[1]{0}', space=sflag, size = 0x4, scoped, tag = 'scoped memory for tpu_custom_call.1']
    #allocation7 [shape = 'u8[4096]{0}', space=vmem, size = 0x1000, scoped, tag = 'output window, operand 0, single buffered']
    %7 = vsyncpa [#allocation3], 0
    %8 = vsyncpa [#allocation6], 0
    %9 = vsyncpa [#allocation4], 0
    // Predicated region
    $region2: #{tpu_custom_call.1} parent=1 // pred_check
      _
    $region3: #{tpu_custom_call.1} parent=1 // pred_check_branch
      %11 = sbr.rel (0) target = $region5
    $region4: #{tpu_custom_call.1} parent=1 // pred_region
      %s13 = ssub.s32 1024, 1024
      %14 = vsyncadd [#allocation3], %s13
      %s15 = sshll.u32 [#allocation2], 4
      %s16 = int_to_ptr.vmem [resolvable:$true] %s15
      %21 = dma.hbm_to_vmem [thread:$0]  %s0, 1024, %s16, [#allocation3], 128, 128, 8
    $region5: #{tpu_custom_call.1} parent=1 // pred_fallthru
      _
    // Predicated region
    $region6: #{tpu_custom_call.1} parent=1 // pred_check
      _
    $region7: #{tpu_custom_call.1} parent=1 // pred_check_branch
      %23 = sbr.rel (0) target = $region9
    $region8: #{tpu_custom_call.1} parent=1 // pred_region
      %s25 = ssub.s32 2048, 2048
      %26 = vsyncadd [#allocation6], %s25
      %s27 = sshll.u32 [#allocation5], 4
      %s28 = int_to_ptr.vmem [resolvable:$true] %s27
      %33 = dma.hbm_to_vmem [thread:$0]  %s1, 2048, %s28, [#allocation6], 128, 128, 8
    $region9: #{tpu_custom_call.1} parent=1 // pred_fallthru
      _
    // Predicated region
    $region10: #{tpu_custom_call.1} parent=1 // pred_check
      _
    $region11: #{tpu_custom_call.1} parent=1 // pred_check_branch
      %35 = sbr.rel (0) target = $region13
    $region12: #{tpu_custom_call.1} parent=1 // pred_region
      %36 = dma.done [#allocation3], 1024
    $region13: #{tpu_custom_call.1} parent=1 // pred_fallthru
      _
    // Predicated region
    $region14: #{tpu_custom_call.1} parent=1 // pred_check
      _
    $region15: #{tpu_custom_call.1} parent=1 // pred_check_branch
      %38 = sbr.rel (0) target = $region17
    $region16: #{tpu_custom_call.1} parent=1 // pred_region
      %39 = dma.done [#allocation6], 2048
    $region17: #{tpu_custom_call.1} parent=1 // pred_fallthru
      _
    %v40 = vld [vmem:[#allocation5] sm:$0xff]
    %v41 = vld [vmem:[#allocation5 + $0x8] sm:$0xff]
    %v42 = vld [vmem:[#allocation5 + $0x10] sm:$0xff]
    %v43 = vld [vmem:[#allocation5 + $0x18] sm:$0xff]
    %v44 = vld [vmem:[#allocation5 + $0x20] sm:$0xff]
    %v45 = vld [vmem:[#allocation5 + $0x28] sm:$0xff]
    %v46 = vld [vmem:[#allocation5 + $0x30] sm:$0xff]
    %v47 = vld [vmem:[#allocation5 + $0x38] sm:$0xff]
    %v48 = vld [vmem:[#allocation5 + $0x40] sm:$0xff]
    %v49 = vld [vmem:[#allocation5 + $0x48] sm:$0xff]
    %v50 = vld [vmem:[#allocation5 + $0x50] sm:$0xff]
    %v51 = vld [vmem:[#allocation5 + $0x58] sm:$0xff]
    %v52 = vld [vmem:[#allocation5 + $0x60] sm:$0xff]
    %v53 = vld [vmem:[#allocation5 + $0x68] sm:$0xff]
    %v54 = vld [vmem:[#allocation5 + $0x70] sm:$0xff]
    %v55 = vld [vmem:[#allocation5 + $0x78] sm:$0xff]
    %v56 = vld [vmem:[#allocation2] sm:$0xff]
    %57 = vmatprep.subr.mxu0 0.0
    %58 = vmatpush1.msra.mxu0 %v55
    %59 = vmatprep.subr.mxu0 0.0
    %60 = vmatpush1.msra.mxu0 %v54
    %61 = vmatprep.subr.mxu0 0.0
    %62 = vmatpush1.msra.mxu0 %v53
    %63 = vmatprep.subr.mxu0 0.0
    %64 = vmatpush1.msra.mxu0 %v52
    %65 = vmatprep.subr.mxu0 0.0
    %66 = vmatpush1.msra.mxu0 %v51
    %67 = vmatprep.subr.mxu0 0.0
    %68 = vmatpush1.msra.mxu0 %v50
    %69 = vmatprep.subr.mxu0 0.0
    %70 = vmatpush1.msra.mxu0 %v49
    %71 = vmatprep.subr.mxu0 0.0
    %72 = vmatpush1.msra.mxu0 %v48
    %73 = vmatprep.subr.mxu0 0.0
    %74 = vmatpush1.msra.mxu0 %v47
    %75 = vmatprep.subr.mxu0 0.0
    %76 = vmatpush1.msra.mxu0 %v46
    %77 = vmatprep.subr.mxu0 0.0
    %78 = vmatpush1.msra.mxu0 %v45
    %79 = vmatprep.subr.mxu0 0.0
    %80 = vmatpush1.msra.mxu0 %v44
    %81 = vmatprep.subr.mxu0 0.0
    %82 = vmatpush1.msra.mxu0 %v43
    %83 = vmatprep.subr.mxu0 0.0
    %84 = vmatpush1.msra.mxu0 %v42
    %85 = vmatprep.subr.mxu0 0.0
    %86 = vmatpush1.msra.mxu0 %v41
    %87 = vmatprep.subr.mxu0 0.0
    %88 = vmatpush1.msra.mxu0 %v40
    %89 = vmatprep.subr.mxu0 0.0
    %90 = vmatpush2.msra.mxu0 0.0
    %91 = vmatprep.subr.mxu0 0.0
    %92 = vmatpush2.msra.mxu0 0.0
    %93 = vmatprep.subr.mxu0 0.0
    %94 = vmatpush2.msra.mxu0 0.0
    %95 = vmatprep.subr.mxu0 0.0
    %96 = vmatpush2.msra.mxu0 0.0
    %97 = vmatprep.subr.mxu0 0.0
    %98 = vmatpush2.msra.mxu0 0.0
    %99 = vmatprep.subr.mxu0 0.0
    %100 = vmatpush2.msra.mxu0 0.0
    %101 = vmatprep.subr.mxu0 0.0
    %102 = vmatpush2.msra.mxu0 0.0
    %103 = vmatprep.subr.mxu0 0.0
    %104 = vmatpush2.msra.mxu0 0.0
    %105 = vmatprep.subr.mxu0 0.0
    %106 = vmatpush2.msra.mxu0 0.0
    %107 = vmatprep.subr.mxu0 0.0
    %108 = vmatpush2.msra.mxu0 0.0
    %109 = vmatprep.subr.mxu0 0.0
    %110 = vmatpush2.msra.mxu0 0.0
    %111 = vmatprep.subr.mxu0 0.0
    %112 = vmatpush2.msra.mxu0 0.0
    %113 = vmatprep.subr.mxu0 0.0
    %114 = vmatpush2.msra.mxu0 0.0
    %115 = vmatprep.subr.mxu0 0.0
    %116 = vmatpush2.msra.mxu0 0.0
    %117 = vmatprep.subr.mxu0 0.0
    %118 = vmatpush2.msra.mxu0 0.0
    %119 = vmatprep.subr.mxu0 0.0
    %120 = vmatpush2.msra.mxu0 0.0
    %121 = vmatprep.mubr.f32.mxu0 0.0
    %122 = vmatmul.mubr.f32.gmra.mxu0 0.0
    %v123 = vpop.f32.mrf.mxu0
    %v124 = vadd.f32 0.0, %v123
    %v125 = vpop.f32.mrf.mxu0
    %126 = vdwg.mxu0
    %v127 = vadd.f32 %v56, %v124
    %v128 = vtanh.pop %v127
    %s129 = scalar_lea.vmem [#allocation2], 8
    %v130 = vld [vmem:[%s129] sm:$0xff]
    %131 = vmatprep.subr.mxu0 0.0
    %132 = vmatpush1.msra.mxu0 %v55
    %133 = vmatprep.subr.mxu0 0.0
    %134 = vmatpush1.msra.mxu0 %v54
    %135 = vmatprep.subr.mxu0 0.0
    %136 = vmatpush1.msra.mxu0 %v53
    %137 = vmatprep.subr.mxu0 0.0
    %138 = vmatpush1.msra.mxu0 %v52
    %139 = vmatprep.subr.mxu0 0.0
    %140 = vmatpush1.msra.mxu0 %v51
    %141 = vmatprep.subr.mxu0 0.0
    %142 = vmatpush1.msra.mxu0 %v50
    %143 = vmatprep.subr.mxu0 0.0
    %144 = vmatpush1.msra.mxu0 %v49
    %145 = vmatprep.subr.mxu0 0.0
    %146 = vmatpush1.msra.mxu0 %v48
    %147 = vmatprep.subr.mxu0 0.0
    %148 = vmatpush1.msra.mxu0 %v47
    %149 = vmatprep.subr.mxu0 0.0
    %150 = vmatpush1.msra.mxu0 %v46
    %151 = vmatprep.subr.mxu0 0.0
    %152 = vmatpush1.msra.mxu0 %v45
    %153 = vmatprep.subr.mxu0 0.0
    %154 = vmatpush1.msra.mxu0 %v44
    %155 = vmatprep.subr.mxu0 0.0
    %156 = vmatpush1.msra.mxu0 %v43
    %157 = vmatprep.subr.mxu0 0.0
    %158 = vmatpush1.msra.mxu0 %v42
    %159 = vmatprep.subr.mxu0 0.0
    %160 = vmatpush1.msra.mxu0 %v41
    %161 = vmatprep.subr.mxu0 0.0
    %162 = vmatpush1.msra.mxu0 %v40
    %163 = vmatprep.subr.mxu0 0.0
    %164 = vmatpush2.msra.mxu0 0.0
    %165 = vmatprep.subr.mxu0 0.0
    %166 = vmatpush2.msra.mxu0 0.0
    %167 = vmatprep.subr.mxu0 0.0
    %168 = vmatpush2.msra.mxu0 0.0
    %169 = vmatprep.subr.mxu0 0.0
    %170 = vmatpush2.msra.mxu0 0.0
    %171 = vmatprep.subr.mxu0 0.0
    %172 = vmatpush2.msra.mxu0 0.0
    %173 = vmatprep.subr.mxu0 0.0
    %174 = vmatpush2.msra.mxu0 0.0
    %175 = vmatprep.subr.mxu0 0.0
    %176 = vmatpush2.msra.mxu0 0.0
    %177 = vmatprep.subr.mxu0 0.0
    %178 = vmatpush2.msra.mxu0 0.0
    %179 = vmatprep.subr.mxu0 0.0
    %180 = vmatpush2.msra.mxu0 0.0
    %181 = vmatprep.subr.mxu0 0.0
    %182 = vmatpush2.msra.mxu0 0.0
    %183 = vmatprep.subr.mxu0 0.0
    %184 = vmatpush2.msra.mxu0 0.0
    %185 = vmatprep.subr.mxu0 0.0
    %186 = vmatpush2.msra.mxu0 0.0
    %187 = vmatprep.subr.mxu0 0.0
    %188 = vmatpush2.msra.mxu0 0.0
    %189 = vmatprep.subr.mxu0 0.0
    %190 = vmatpush2.msra.mxu0 0.0
    %191 = vmatprep.subr.mxu0 0.0
    %192 = vmatpush2.msra.mxu0 0.0
    %193 = vmatprep.subr.mxu0 0.0
    %194 = vmatpush2.msra.mxu0 0.0
    %195 = vmatprep.mubr.f32.mxu0 0.0
    %196 = vmatmul.mubr.f32.gmra.mxu0 %v128
    %v197 = vpop.f32.mrf.mxu0
    %v198 = vadd.f32 0.0, %v197
    %v199 = vpop.f32.mrf.mxu0
    %200 = vdwg.mxu0
    %v201 = vadd.f32 %v130, %v198
    %v202 = vtanh.pop %v201
    %s203 = scalar_lea.vmem [#allocation2], 16
    %v204 = vld [vmem:[%s203] sm:$0xff]
    %205 = vmatprep.subr.mxu0 0.0
    %206 = vmatpush1.msra.mxu0 %v55
    %207 = vmatprep.subr.mxu0 0.0
    %208 = vmatpush1.msra.mxu0 %v54
    %209 = vmatprep.subr.mxu0 0.0
    %210 = vmatpush1.msra.mxu0 %v53
    %211 = vmatprep.subr.mxu0 0.0
    %212 = vmatpush1.msra.mxu0 %v52
    %213 = vmatprep.subr.mxu0 0.0
    %214 = vmatpush1.msra.mxu0 %v51
    %215 = vmatprep.subr.mxu0 0.0
    %216 = vmatpush1.msra.mxu0 %v50
    %217 = vmatprep.subr.mxu0 0.0
    %218 = vmatpush1.msra.mxu0 %v49
    %219 = vmatprep.subr.mxu0 0.0
    %220 = vmatpush1.msra.mxu0 %v48
    %221 = vmatprep.subr.mxu0 0.0
    %222 = vmatpush1.msra.mxu0 %v47
    %223 = vmatprep.subr.mxu0 0.0
    %224 = vmatpush1.msra.mxu0 %v46
    %225 = vmatprep.subr.mxu0 0.0
    %226 = vmatpush1.msra.mxu0 %v45
    %227 = vmatprep.subr.mxu0 0.0
    %228 = vmatpush1.msra.mxu0 %v44
    %229 = vmatprep.subr.mxu0 0.0
    %230 = vmatpush1.msra.mxu0 %v43
    %231 = vmatprep.subr.mxu0 0.0
    %232 = vmatpush1.msra.mxu0 %v42
    %233 = vmatprep.subr.mxu0 0.0
    %234 = vmatpush1.msra.mxu0 %v41
    %235 = vmatprep.subr.mxu0 0.0
    %236 = vmatpush1.msra.mxu0 %v40
    %237 = vmatprep.subr.mxu0 0.0
    %238 = vmatpush2.msra.mxu0 0.0
    %239 = vmatprep.subr.mxu0 0.0
    %240 = vmatpush2.msra.mxu0 0.0
    %241 = vmatprep.subr.mxu0 0.0
    %242 = vmatpush2.msra.mxu0 0.0
    %243 = vmatprep.subr.mxu0 0.0
    %244 = vmatpush2.msra.mxu0 0.0
    %245 = vmatprep.subr.mxu0 0.0
    %246 = vmatpush2.msra.mxu0 0.0
    %247 = vmatprep.subr.mxu0 0.0
    %248 = vmatpush2.msra.mxu0 0.0
    %249 = vmatprep.subr.mxu0 0.0
    %250 = vmatpush2.msra.mxu0 0.0
    %251 = vmatprep.subr.mxu0 0.0
    %252 = vmatpush2.msra.mxu0 0.0
    %253 = vmatprep.subr.mxu0 0.0
    %254 = vmatpush2.msra.mxu0 0.0
    %255 = vmatprep.subr.mxu0 0.0
    %256 = vmatpush2.msra.mxu0 0.0
    %257 = vmatprep.subr.mxu0 0.0
    %258 = vmatpush2.msra.mxu0 0.0
    %259 = vmatprep.subr.mxu0 0.0
    %260 = vmatpush2.msra.mxu0 0.0
    %261 = vmatprep.subr.mxu0 0.0
    %262 = vmatpush2.msra.mxu0 0.0
    %263 = vmatprep.subr.mxu0 0.0
    %264 = vmatpush2.msra.mxu0 0.0
    %265 = vmatprep.subr.mxu0 0.0
    %266 = vmatpush2.msra.mxu0 0.0
    %267 = vmatprep.subr.mxu0 0.0
    %268 = vmatpush2.msra.mxu0 0.0
    %269 = vmatprep.mubr.f32.mxu0 0.0
    %270 = vmatmul.mubr.f32.gmra.mxu0 %v202
    %v271 = vpop.f32.mrf.mxu0
    %v272 = vadd.f32 0.0, %v271
    %v273 = vpop.f32.mrf.mxu0
    %274 = vdwg.mxu0
    %v275 = vadd.f32 %v204, %v272
    %v276 = vtanh.pop %v275
    %s277 = scalar_lea.vmem [#allocation2], 24
    %v278 = vld [vmem:[%s277] sm:$0xff]
    %279 = vmatprep.subr.mxu0 0.0
    %280 = vmatpush1.msra.mxu0 %v55
    %281 = vmatprep.subr.mxu0 0.0
    %282 = vmatpush1.msra.mxu0 %v54
    %283 = vmatprep.subr.mxu0 0.0
    %284 = vmatpush1.msra.mxu0 %v53
    %285 = vmatprep.subr.mxu0 0.0
    %286 = vmatpush1.msra.mxu0 %v52
    %287 = vmatprep.subr.mxu0 0.0
    %288 = vmatpush1.msra.mxu0 %v51
    %289 = vmatprep.subr.mxu0 0.0
    %290 = vmatpush1.msra.mxu0 %v50
    %291 = vmatprep.subr.mxu0 0.0
    %292 = vmatpush1.msra.mxu0 %v49
    %293 = vmatprep.subr.mxu0 0.0
    %294 = vmatpush1.msra.mxu0 %v48
    %295 = vmatprep.subr.mxu0 0.0
    %296 = vmatpush1.msra.mxu0 %v47
    %297 = vmatprep.subr.mxu0 0.0
    %298 = vmatpush1.msra.mxu0 %v46
    %299 = vmatprep.subr.mxu0 0.0
    %300 = vmatpush1.msra.mxu0 %v45
    %301 = vmatprep.subr.mxu0 0.0
    %302 = vmatpush1.msra.mxu0 %v44
    %303 = vmatprep.subr.mxu0 0.0
    %304 = vmatpush1.msra.mxu0 %v43
    %305 = vmatprep.subr.mxu0 0.0
    %306 = vmatpush1.msra.mxu0 %v42
    %307 = vmatprep.subr.mxu0 0.0
    %308 = vmatpush1.msra.mxu0 %v41
    %309 = vmatprep.subr.mxu0 0.0
    %310 = vmatpush1.msra.mxu0 %v40
    %311 = vmatprep.subr.mxu0 0.0
    %312 = vmatpush2.msra.mxu0 0.0
    %313 = vmatprep.subr.mxu0 0.0
    %314 = vmatpush2.msra.mxu0 0.0
    %315 = vmatprep.subr.mxu0 0.0
    %316 = vmatpush2.msra.mxu0 0.0
    %317 = vmatprep.subr.mxu0 0.0
    %318 = vmatpush2.msra.mxu0 0.0
    %319 = vmatprep.subr.mxu0 0.0
    %320 = vmatpush2.msra.mxu0 0.0
    %321 = vmatprep.subr.mxu0 0.0
    %322 = vmatpush2.msra.mxu0 0.0
    %323 = vmatprep.subr.mxu0 0.0
    %324 = vmatpush2.msra.mxu0 0.0
    %325 = vmatprep.subr.mxu0 0.0
    %326 = vmatpush2.msra.mxu0 0.0
    %327 = vmatprep.subr.mxu0 0.0
    %328 = vmatpush2.msra.mxu0 0.0
    %329 = vmatprep.subr.mxu0 0.0
    %330 = vmatpush2.msra.mxu0 0.0
    %331 = vmatprep.subr.mxu0 0.0
    %332 = vmatpush2.msra.mxu0 0.0
    %333 = vmatprep.subr.mxu0 0.0
    %334 = vmatpush2.msra.mxu0 0.0
    %335 = vmatprep.subr.mxu0 0.0
    %336 = vmatpush2.msra.mxu0 0.0
    %337 = vmatprep.subr.mxu0 0.0
    %338 = vmatpush2.msra.mxu0 0.0
    %339 = vmatprep.subr.mxu0 0.0
    %340 = vmatpush2.msra.mxu0 0.0
    %341 = vmatprep.subr.mxu0 0.0
    %342 = vmatpush2.msra.mxu0 0.0
    %343 = vmatprep.mubr.f32.mxu0 0.0
    %344 = vmatmul.mubr.f32.gmra.mxu0 %v276
    %v345 = vpop.f32.mrf.mxu0
    %v346 = vadd.f32 0.0, %v345
    %v347 = vpop.f32.mrf.mxu0
    %348 = vdwg.mxu0
    %v349 = vadd.f32 %v278, %v346
    %v350 = vtanh.pop %v349
    %s351 = scalar_lea.vmem [#allocation2], 32
    %v352 = vld [vmem:[%s351] sm:$0xff]
    %353 = vmatprep.subr.mxu0 0.0
    %354 = vmatpush1.msra.mxu0 %v55
    %355 = vmatprep.subr.mxu0 0.0
    %356 = vmatpush1.msra.mxu0 %v54
    %357 = vmatprep.subr.mxu0 0.0
    %358 = vmatpush1.msra.mxu0 %v53
    %359 = vmatprep.subr.mxu0 0.0
    %360 = vmatpush1.msra.mxu0 %v52
    %361 = vmatprep.subr.mxu0 0.0
    %362 = vmatpush1.msra.mxu0 %v51
    %363 = vmatprep.subr.mxu0 0.0
    %364 = vmatpush1.msra.mxu0 %v50
    %365 = vmatprep.subr.mxu0 0.0
    %366 = vmatpush1.msra.mxu0 %v49
    %367 = vmatprep.subr.mxu0 0.0
    %368 = vmatpush1.msra.mxu0 %v48
    %369 = vmatprep.subr.mxu0 0.0
    %370 = vmatpush1.msra.mxu0 %v47
    %371 = vmatprep.subr.mxu0 0.0
    %372 = vmatpush1.msra.mxu0 %v46
    %373 = vmatprep.subr.mxu0 0.0
    %374 = vmatpush1.msra.mxu0 %v45
    %375 = vmatprep.subr.mxu0 0.0
    %376 = vmatpush1.msra.mxu0 %v44
    %377 = vmatprep.subr.mxu0 0.0
    %378 = vmatpush1.msra.mxu0 %v43
    %379 = vmatprep.subr.mxu0 0.0
    %380 = vmatpush1.msra.mxu0 %v42
    %381 = vmatprep.subr.mxu0 0.0
    %382 = vmatpush1.msra.mxu0 %v41
    %383 = vmatprep.subr.mxu0 0.0
    %384 = vmatpush1.msra.mxu0 %v40
    %385 = vmatprep.subr.mxu0 0.0
    %386 = vmatpush2.msra.mxu0 0.0
    %387 = vmatprep.subr.mxu0 0.0
    %388 = vmatpush2.msra.mxu0 0.0
    %389 = vmatprep.subr.mxu0 0.0
    %390 = vmatpush2.msra.mxu0 0.0
    %391 = vmatprep.subr.mxu0 0.0
    %392 = vmatpush2.msra.mxu0 0.0
    %393 = vmatprep.subr.mxu0 0.0
    %394 = vmatpush2.msra.mxu0 0.0
    %395 = vmatprep.subr.mxu0 0.0
    %396 = vmatpush2.msra.mxu0 0.0
    %397 = vmatprep.subr.mxu0 0.0
    %398 = vmatpush2.msra.mxu0 0.0
    %399 = vmatprep.subr.mxu0 0.0
    %400 = vmatpush2.msra.mxu0 0.0
    %401 = vmatprep.subr.mxu0 0.0
    %402 = vmatpush2.msra.mxu0 0.0
    %403 = vmatprep.subr.mxu0 0.0
    %404 = vmatpush2.msra.mxu0 0.0
    %405 = vmatprep.subr.mxu0 0.0
    %406 = vmatpush2.msra.mxu0 0.0
    %407 = vmatprep.subr.mxu0 0.0
    %408 = vmatpush2.msra.mxu0 0.0
    %409 = vmatprep.subr.mxu0 0.0
    %410 = vmatpush2.msra.mxu0 0.0
    %411 = vmatprep.subr.mxu0 0.0
    %412 = vmatpush2.msra.mxu0 0.0
    %413 = vmatprep.subr.mxu0 0.0
    %414 = vmatpush2.msra.mxu0 0.0
    %415 = vmatprep.subr.mxu0 0.0
    %416 = vmatpush2.msra.mxu0 0.0
    %417 = vmatprep.mubr.f32.mxu0 0.0
    %418 = vmatmul.mubr.f32.gmra.mxu0 %v350
    %v419 = vpop.f32.mrf.mxu0
    %v420 = vadd.f32 0.0, %v419
    %v421 = vpop.f32.mrf.mxu0
    %422 = vdwg.mxu0
    %v423 = vadd.f32 %v352, %v420
    %v424 = vtanh.pop %v423
    %s425 = scalar_lea.vmem [#allocation2], 40
    %v426 = vld [vmem:[%s425] sm:$0xff]
    %427 = vmatprep.subr.mxu0 0.0
    %428 = vmatpush1.msra.mxu0 %v55
    %429 = vmatprep.subr.mxu0 0.0
    %430 = vmatpush1.msra.mxu0 %v54
    %431 = vmatprep.subr.mxu0 0.0
    %432 = vmatpush1.msra.mxu0 %v53
    %433 = vmatprep.subr.mxu0 0.0
    %434 = vmatpush1.msra.mxu0 %v52
    %435 = vmatprep.subr.mxu0 0.0
    %436 = vmatpush1.msra.mxu0 %v51
    %437 = vmatprep.subr.mxu0 0.0
    %438 = vmatpush1.msra.mxu0 %v50
    %439 = vmatprep.subr.mxu0 0.0
    %440 = vmatpush1.msra.mxu0 %v49
    %441 = vmatprep.subr.mxu0 0.0
    %442 = vmatpush1.msra.mxu0 %v48
    %443 = vmatprep.subr.mxu0 0.0
    %444 = vmatpush1.msra.mxu0 %v47
    %445 = vmatprep.subr.mxu0 0.0
    %446 = vmatpush1.msra.mxu0 %v46
    %447 = vmatprep.subr.mxu0 0.0
    %448 = vmatpush1.msra.mxu0 %v45
    %449 = vmatprep.subr.mxu0 0.0
    %450 = vmatpush1.msra.mxu0 %v44
    %451 = vmatprep.subr.mxu0 0.0
    %452 = vmatpush1.msra.mxu0 %v43
    %453 = vmatprep.subr.mxu0 0.0
    %454 = vmatpush1.msra.mxu0 %v42
    %455 = vmatprep.subr.mxu0 0.0
    %456 = vmatpush1.msra.mxu0 %v41
    %457 = vmatprep.subr.mxu0 0.0
    %458 = vmatpush1.msra.mxu0 %v40
    %459 = vmatprep.subr.mxu0 0.0
    %460 = vmatpush2.msra.mxu0 0.0
    %461 = vmatprep.subr.mxu0 0.0
    %462 = vmatpush2.msra.mxu0 0.0
    %463 = vmatprep.subr.mxu0 0.0
    %464 = vmatpush2.msra.mxu0 0.0
    %465 = vmatprep.subr.mxu0 0.0
    %466 = vmatpush2.msra.mxu0 0.0
    %467 = vmatprep.subr.mxu0 0.0
    %468 = vmatpush2.msra.mxu0 0.0
    %469 = vmatprep.subr.mxu0 0.0
    %470 = vmatpush2.msra.mxu0 0.0
    %471 = vmatprep.subr.mxu0 0.0
    %472 = vmatpush2.msra.mxu0 0.0
    %473 = vmatprep.subr.mxu0 0.0
    %474 = vmatpush2.msra.mxu0 0.0
    %475 = vmatprep.subr.mxu0 0.0
    %476 = vmatpush2.msra.mxu0 0.0
    %477 = vmatprep.subr.mxu0 0.0
    %478 = vmatpush2.msra.mxu0 0.0
    %479 = vmatprep.subr.mxu0 0.0
    %480 = vmatpush2.msra.mxu0 0.0
    %481 = vmatprep.subr.mxu0 0.0
    %482 = vmatpush2.msra.mxu0 0.0
    %483 = vmatprep.subr.mxu0 0.0
    %484 = vmatpush2.msra.mxu0 0.0
    %485 = vmatprep.subr.mxu0 0.0
    %486 = vmatpush2.msra.mxu0 0.0
    %487 = vmatprep.subr.mxu0 0.0
    %488 = vmatpush2.msra.mxu0 0.0
    %489 = vmatprep.subr.mxu0 0.0
    %490 = vmatpush2.msra.mxu0 0.0
    %491 = vmatprep.mubr.f32.mxu0 0.0
    %492 = vmatmul.mubr.f32.gmra.mxu0 %v424
    %v493 = vpop.f32.mrf.mxu0
    %v494 = vadd.f32 0.0, %v493
    %v495 = vpop.f32.mrf.mxu0
    %496 = vdwg.mxu0
    %v497 = vadd.f32 %v426, %v494
    %v498 = vtanh.pop %v497
    %s499 = scalar_lea.vmem [#allocation2], 48
    %v500 = vld [vmem:[%s499] sm:$0xff]
    %501 = vmatprep.subr.mxu0 0.0
    %502 = vmatpush1.msra.mxu0 %v55
    %503 = vmatprep.subr.mxu0 0.0
    %504 = vmatpush1.msra.mxu0 %v54
    %505 = vmatprep.subr.mxu0 0.0
    %506 = vmatpush1.msra.mxu0 %v53
    %507 = vmatprep.subr.mxu0 0.0
    %508 = vmatpush1.msra.mxu0 %v52
    %509 = vmatprep.subr.mxu0 0.0
    %510 = vmatpush1.msra.mxu0 %v51
    %511 = vmatprep.subr.mxu0 0.0
    %512 = vmatpush1.msra.mxu0 %v50
    %513 = vmatprep.subr.mxu0 0.0
    %514 = vmatpush1.msra.mxu0 %v49
    %515 = vmatprep.subr.mxu0 0.0
    %516 = vmatpush1.msra.mxu0 %v48
    %517 = vmatprep.subr.mxu0 0.0
    %518 = vmatpush1.msra.mxu0 %v47
    %519 = vmatprep.subr.mxu0 0.0
    %520 = vmatpush1.msra.mxu0 %v46
    %521 = vmatprep.subr.mxu0 0.0
    %522 = vmatpush1.msra.mxu0 %v45
    %523 = vmatprep.subr.mxu0 0.0
    %524 = vmatpush1.msra.mxu0 %v44
    %525 = vmatprep.subr.mxu0 0.0
    %526 = vmatpush1.msra.mxu0 %v43
    %527 = vmatprep.subr.mxu0 0.0
    %528 = vmatpush1.msra.mxu0 %v42
    %529 = vmatprep.subr.mxu0 0.0
    %530 = vmatpush1.msra.mxu0 %v41
    %531 = vmatprep.subr.mxu0 0.0
    %532 = vmatpush1.msra.mxu0 %v40
    %533 = vmatprep.subr.mxu0 0.0
    %534 = vmatpush2.msra.mxu0 0.0
    %535 = vmatprep.subr.mxu0 0.0
    %536 = vmatpush2.msra.mxu0 0.0
    %537 = vmatprep.subr.mxu0 0.0
    %538 = vmatpush2.msra.mxu0 0.0
    %539 = vmatprep.subr.mxu0 0.0
    %540 = vmatpush2.msra.mxu0 0.0
    %541 = vmatprep.subr.mxu0 0.0
    %542 = vmatpush2.msra.mxu0 0.0
    %543 = vmatprep.subr.mxu0 0.0
    %544 = vmatpush2.msra.mxu0 0.0
    %545 = vmatprep.subr.mxu0 0.0
    %546 = vmatpush2.msra.mxu0 0.0
    %547 = vmatprep.subr.mxu0 0.0
    %548 = vmatpush2.msra.mxu0 0.0
    %549 = vmatprep.subr.mxu0 0.0
    %550 = vmatpush2.msra.mxu0 0.0
    %551 = vmatprep.subr.mxu0 0.0
    %552 = vmatpush2.msra.mxu0 0.0
    %553 = vmatprep.subr.mxu0 0.0
    %554 = vmatpush2.msra.mxu0 0.0
    %555 = vmatprep.subr.mxu0 0.0
    %556 = vmatpush2.msra.mxu0 0.0
    %557 = vmatprep.subr.mxu0 0.0
    %558 = vmatpush2.msra.mxu0 0.0
    %559 = vmatprep.subr.mxu0 0.0
    %560 = vmatpush2.msra.mxu0 0.0
    %561 = vmatprep.subr.mxu0 0.0
    %562 = vmatpush2.msra.mxu0 0.0
    %563 = vmatprep.subr.mxu0 0.0
    %564 = vmatpush2.msra.mxu0 0.0
    %565 = vmatprep.mubr.f32.mxu0 0.0
    %566 = vmatmul.mubr.f32.gmra.mxu0 %v498
    %v567 = vpop.f32.mrf.mxu0
    %v568 = vadd.f32 0.0, %v567
    %v569 = vpop.f32.mrf.mxu0
    %570 = vdwg.mxu0
    %v571 = vadd.f32 %v500, %v568
    %v572 = vtanh.pop %v571
    %s573 = scalar_lea.vmem [#allocation2], 56
    %v574 = vld [vmem:[%s573] sm:$0xff]
    %575 = vmatprep.subr.mxu0 0.0
    %576 = vmatpush1.msra.mxu0 %v55
    %577 = vmatprep.subr.mxu0 0.0
    %578 = vmatpush1.msra.mxu0 %v54
    %579 = vmatprep.subr.mxu0 0.0
    %580 = vmatpush1.msra.mxu0 %v53
    %581 = vmatprep.subr.mxu0 0.0
    %582 = vmatpush1.msra.mxu0 %v52
    %583 = vmatprep.subr.mxu0 0.0
    %584 = vmatpush1.msra.mxu0 %v51
    %585 = vmatprep.subr.mxu0 0.0
    %586 = vmatpush1.msra.mxu0 %v50
    %587 = vmatprep.subr.mxu0 0.0
    %588 = vmatpush1.msra.mxu0 %v49
    %589 = vmatprep.subr.mxu0 0.0
    %590 = vmatpush1.msra.mxu0 %v48
    %591 = vmatprep.subr.mxu0 0.0
    %592 = vmatpush1.msra.mxu0 %v47
    %593 = vmatprep.subr.mxu0 0.0
    %594 = vmatpush1.msra.mxu0 %v46
    %595 = vmatprep.subr.mxu0 0.0
    %596 = vmatpush1.msra.mxu0 %v45
    %597 = vmatprep.subr.mxu0 0.0
    %598 = vmatpush1.msra.mxu0 %v44
    %599 = vmatprep.subr.mxu0 0.0
    %600 = vmatpush1.msra.mxu0 %v43
    %601 = vmatprep.subr.mxu0 0.0
    %602 = vmatpush1.msra.mxu0 %v42
    %603 = vmatprep.subr.mxu0 0.0
    %604 = vmatpush1.msra.mxu0 %v41
    %605 = vmatprep.subr.mxu0 0.0
    %606 = vmatpush1.msra.mxu0 %v40
    %607 = vmatprep.subr.mxu0 0.0
    %608 = vmatpush2.msra.mxu0 0.0
    %609 = vmatprep.subr.mxu0 0.0
    %610 = vmatpush2.msra.mxu0 0.0
    %611 = vmatprep.subr.mxu0 0.0
    %612 = vmatpush2.msra.mxu0 0.0
    %613 = vmatprep.subr.mxu0 0.0
    %614 = vmatpush2.msra.mxu0 0.0
    %615 = vmatprep.subr.mxu0 0.0
    %616 = vmatpush2.msra.mxu0 0.0
    %617 = vmatprep.subr.mxu0 0.0
    %618 = vmatpush2.msra.mxu0 0.0
    %619 = vmatprep.subr.mxu0 0.0
    %620 = vmatpush2.msra.mxu0 0.0
    %621 = vmatprep.subr.mxu0 0.0
    %622 = vmatpush2.msra.mxu0 0.0
    %623 = vmatprep.subr.mxu0 0.0
    %624 = vmatpush2.msra.mxu0 0.0
    %625 = vmatprep.subr.mxu0 0.0
    %626 = vmatpush2.msra.mxu0 0.0
    %627 = vmatprep.subr.mxu0 0.0
    %628 = vmatpush2.msra.mxu0 0.0
    %629 = vmatprep.subr.mxu0 0.0
    %630 = vmatpush2.msra.mxu0 0.0
    %631 = vmatprep.subr.mxu0 0.0
    %632 = vmatpush2.msra.mxu0 0.0
    %633 = vmatprep.subr.mxu0 0.0
    %634 = vmatpush2.msra.mxu0 0.0
    %635 = vmatprep.subr.mxu0 0.0
    %636 = vmatpush2.msra.mxu0 0.0
    %637 = vmatprep.subr.mxu0 0.0
    %638 = vmatpush2.msra.mxu0 0.0
    %639 = vmatprep.mubr.f32.mxu0 0.0
    %640 = vmatmul.mubr.f32.gmra.mxu0 %v572
    %v641 = vpop.f32.mrf.mxu0
    %v642 = vadd.f32 0.0, %v641
    %v643 = vpop.f32.mrf.mxu0
    %644 = vdwg.mxu0
    %v645 = vadd.f32 %v574, %v642
    %v646 = vtanh.pop %v645
    %647 = vst [vmem:[#allocation7] sm:$0xff] %v646
    // Predicated region
    $region18: #{tpu_custom_call.1} parent=1 // pred_check
      _
    $region19: #{tpu_custom_call.1} parent=1 // pred_check_branch
      %649 = sbr.rel (0) target = $region21
    $region20: #{tpu_custom_call.1} parent=1 // pred_region
      %s651 = ssub.s32 128, 128
      %652 = vsyncadd [#allocation4], %s651
      %s654 = sshll.u32 [#allocation7], 4
      %s655 = int_to_ptr.vmem [resolvable:$true] %s654
      %657 = dma.vmem_to_hbm [thread:$0]  %s655, 128, %s2, [#allocation4]
    $region21: #{tpu_custom_call.1} parent=1 // pred_fallthru
      _
    // Predicated region
    $region22: #{tpu_custom_call.1} parent=1 // pred_check
      _
    $region23: #{tpu_custom_call.1} parent=1 // pred_check_branch
      %659 = sbr.rel (0) target = $region25
    $region24: #{tpu_custom_call.1} parent=1 // pred_region
      %660 = dma.done [#allocation4], 128
    $region25: #{tpu_custom_call.1} parent=1 // pred_fallthru
      _
    %661 = vsyncpa [#allocation3], 1
    %662 = vsyncpa [#allocation6], 1
    %663 = vsyncpa [#allocation4], 1

</llo_original>
